<compile_context>
chip_gen: v7x
topology: tpu7x:2x2x1
jax: 0.10.0
libtpu: 0.0.40
codegen_flags: <defaults>
</compile_context>

<pallas_src>
import functools

import numpy as np
import jax
import jax.numpy as jnp
from jax.experimental import pallas as pl
from jax.experimental.pallas import tpu as pltpu

_LANE = 128
_SUBLANE = 8


def _round_up(x, m):
    return ((x + m - 1) // m) * m


def _make_kernel(group_entries, n_groups):
    """group_entries[g]: tuple of (feature_index, row_offset) static-int pairs
    describing where each feature's vocab rows sit inside group g's
    (V_group_pad, 128) slab."""

    def kernel(idx_ref, *refs):
        # idx_ref       : (n_tile, F) int32 category ids for this batch tile.
        # refs[:n_groups]: per-group packed table slabs, (V_g_pad, 128) f32.
        # refs[n_groups] : (n_tile, D_pad) f32 output tile.
        slab_refs = refs[:n_groups]
        out_ref = refs[n_groups]
        n_tile = out_ref.shape[0]

        # Single iota per grid step at the widest group width; narrower groups
        # reuse a lane-prefix slice (no per-feature broadcasted_iota).
        v_max = max(int(s.shape[0]) for s in slab_refs)
        col_iota = jax.lax.broadcasted_iota(jnp.int32, (n_tile, v_max), 1)

        for g in range(n_groups):            # n_groups is a static Python int
            if not group_entries[g]:
                out_ref[:, g * _LANE:(g + 1) * _LANE] = jnp.zeros(
                    (n_tile, _LANE), jnp.float32)
                continue

            slab = slab_refs[g][...]          # (v_g, 128), VMEM-resident
            v_g = slab.shape[0]
            iota_g = col_iota[:, :v_g]

            # Multi-hot over this group's packed vocab rows: for each feature
            # in the group exactly one column (row_offset + id) is hot per row.
            hot = None
            for (f, row_off) in group_entries[g]:
                oid = idx_ref[:, f:f + 1] + row_off       # (n_tile, 1) int32
                m = iota_g == oid
                hot = m if hot is None else jnp.logical_or(hot, m)
            onehot = hot.astype(jnp.float32)              # exact 0/1

            # MXU: (n_tile, v_g) @ (v_g, 128).  Row ranges are disjoint per
            # feature, so this reproduces the concatenated lookup for this
            # 128-column slice of the output.
            part = jnp.dot(onehot, slab, preferred_element_type=jnp.float32)

            # Direct 128-aligned, unmasked store; no full-width accumulator.
            out_ref[:, g * _LANE:(g + 1) * _LANE] = part

        # NOTE: out-of-range / negative ids contribute an all-zero embedding
        # row (no hot column) instead of raising like torch.nn.Embedding.
        # TODO(synk): training-mode nn.Dropout (stochastic mask + 1/(1-p)
        # scale) is not implemented; eval-mode Dropout is the identity, which
        # is what this kernel computes.

    return kernel


def plan_groups(embedding_dimensions):
    """Static packing plan (hoisted out of the per-call path).

    Returns (placements, group_entries, group_rows, d_total, d_pad) where
    placements[g] is a list of (feature, feat_col_start, n_cols,
    group_col_start, row_offset) tuples and group_entries[g] are the
    (feature, row_offset) pairs the kernel needs.
    """
    vocabs = [int(v) for v, _ in embedding_dimensions]
    dims = [int(d) for _, d in embedding_dimensions]
    d_total = sum(dims)
    d_pad = _round_up(max(d_total, 1), _LANE)
    n_groups = d_pad // _LANE
    col_off = np.concatenate([[0], np.cumsum(dims)[:-1]]).astype(int)

    placements, group_entries, group_rows = [], [], []
    for g in range(n_groups):
        g_lo, g_hi = g * _LANE, (g + 1) * _LANE
        entries, rows, row = [], [], 0
        for f, (off, d, v) in enumerate(zip(col_off, dims, vocabs)):
            off = int(off)
            lo, hi = max(off, g_lo), min(off + d, g_hi)
            if lo < hi:
                entries.append((f, lo - off, hi - lo, lo - g_lo, row))
                rows.append((f, row))
                row += v
        placements.append(entries)
        group_entries.append(tuple(rows))
        group_rows.append(_round_up(max(row, _SUBLANE), _SUBLANE))
    return placements, tuple(group_entries), group_rows, d_total, d_pad


def pack_group_slabs(tables, placements, group_rows, dtype=jnp.float32):
    """Pack per-feature tables row-wise into one lane-dense (V_g_pad, 128) slab
    per 128-column output group.  Done once at construction time."""
    slabs = []
    for entries, v_pad in zip(placements, group_rows):
        slab = np.zeros((v_pad, _LANE), np.float32)
        for (f, fcs, nc, gcs, row) in entries:
            t = np.asarray(tables[f], np.float32)
            slab[row:row + t.shape[0], gcs:gcs + nc] = t[:, fcs:fcs + nc]
        slabs.append(jnp.asarray(slab, dtype))
    return tuple(slabs)


@functools.partial(jax.jit, static_argnames=("group_entries", "d_total"))
def _embedding_forward_impl(categorical_data, slabs, *, group_entries, d_total):
    n, n_feat = categorical_data.shape
    n_groups = len(slabs)
    d_pad = n_groups * _LANE

    # 128-row batch tiles: >=2 grid steps for n>=256 (both v7x TCs busy),
    # matches v5e's 128x128 MXU, low vreg pressure.  Tiny batches round to 8.
    n_tile = _LANE if n >= _LANE else _round_up(max(n, 1), _SUBLANE)
    n_pad = _round_up(n, n_tile)

    idx = categorical_data.astype(jnp.int32)
    if n_pad != n:
        # Padding rows use id 0 (valid for every vocab) and are sliced off.
        idx = jnp.pad(idx, ((0, n_pad - n), (0, 0)))

    kernel = _make_kernel(group_entries, n_groups)

    in_specs = [pl.BlockSpec((n_tile, n_feat), lambda i: (i, 0))]
    in_specs += [
        # Full-slab block with a constant index_map -> DMA'd once per call,
        # stays VMEM-resident across all batch tiles.
        pl.BlockSpec((int(s.shape[0]), _LANE), lambda i: (0, 0))
        for s in slabs
    ]
    out_spec = pl.BlockSpec((n_tile, d_pad), lambda i: (i, 0))

    # VMEM budget from actual resident bytes (x2 for default double
    # buffering), capped at 56 MiB so the request is valid on v7x (64 MiB)
    # as well as v5e/v6e (128 MiB).
    slab_bytes = sum(
        int(s.shape[0]) * int(s.shape[1]) * s.dtype.itemsize for s in slabs)
    tile_bytes = n_tile * n_feat * 4 + n_tile * d_pad * 4
    vmem_limit = int(
        min(max(2 * (slab_bytes + tile_bytes) + (8 << 20), 32 << 20), 56 << 20))

    out = pl.pallas_call(
        kernel,
        out_shape=jax.ShapeDtypeStruct((n_pad, d_pad), jnp.float32),
        grid_spec=pltpu.PrefetchScalarGridSpec(
            num_scalar_prefetch=0,
            grid=(n_pad // n_tile,),
            in_specs=in_specs,
            out_specs=out_spec,
        ),
        compiler_params=pltpu.CompilerParams(
            # Independent batch tiles -> shards across v7x's two TensorCores.
            dimension_semantics=("parallel",),
            vmem_limit_bytes=vmem_limit,
        ),
    )(idx, *slabs)

    return out[:n, :d_total]


class EmbeddingPallas:
    """JAX/Pallas mirror of dies.embedding.Embedding (eval mode)."""

    def __init__(self, categorical_dimensions, embedding_dropout,
                 embedding_dimensions=None, *, key):
        self.categorical_dimensions = categorical_dimensions
        if embedding_dimensions is None:
            self.embedding_dimensions = [
                (x, min(50, (x + 1) // 2)) for x in categorical_dimensions
            ]
        else:
            self.embedding_dimensions = embedding_dimensions
        self.no_of_embeddings = sum(y for _, y in self.embedding_dimensions)
        self.embedding_dropout = embedding_dropout  # identity in eval mode

        # Deterministic init: nn.Embedding default is N(0, 1).
        keys = jax.random.split(key, len(self.embedding_dimensions))
        self.tables = [
            jax.random.normal(k, (x, y), dtype=jnp.float32)
            for k, (x, y) in zip(keys, self.embedding_dimensions)
        ]

        # Hoisted out of the per-call path: static grouping plan + packed slabs.
        placements, self._group_entries, group_rows, self._d_total, self._d_pad = \
            plan_groups(self.embedding_dimensions)
        self._slabs = pack_group_slabs(self.tables, placements, group_rows)

    def __call__(self, categorical_data):
        return _embedding_forward_impl(
            categorical_data, self._slabs,
            group_entries=self._group_entries, d_total=self._d_total)


def _reference_forward(categorical_data, tables):
    """Pure-JAX reference: per-feature gather + concat along dim 1."""
    parts = [
        jnp.take(t, categorical_data[:, i].astype(jnp.int32), axis=0)
        for i, t in enumerate(tables)
    ]
    return jnp.concatenate(parts, axis=1)


if __name__ == "__main__":
    key = jax.random.PRNGKey(0)
    k_param, k_param2, k_data, k_data2, k_data3 = jax.random.split(key, 5)

    def make_data(k, n, vocab_sizes):
        ks = jax.random.split(k, len(vocab_sizes))
        return jnp.stack(
            [jax.random.randint(ks[i], (n,), 0, v, dtype=jnp.int32)
             for i, v in enumerate(vocab_sizes)],
            axis=1)  # (n, F) int32

    # Cases 1 & 2: default embedding dims (D_total=20 -> one 128-column group).
    categorical_dimensions = [10, 7, 16, 5]
    module = EmbeddingPallas(categorical_dimensions, 0.1, key=k_param)

    # Case 1: tiny batch (single padded tile).
    data_small = make_data(k_data, 8, categorical_dimensions)
    out_small = jax.block_until_ready(module(data_small))
    ref_small = _reference_forward(data_small, module.tables)
    np.testing.assert_allclose(np.asarray(out_small), np.asarray(ref_small),
                               rtol=1e-5, atol=1e-5)
    assert out_small.shape == (8, module.no_of_embeddings)

    # Case 2: batch that exercises the grid (n_tile=128 -> 2 batch tiles).
    data_big = make_data(k_data2, 200, categorical_dimensions)
    out_big = jax.block_until_ready(module(data_big))
    ref_big = _reference_forward(data_big, module.tables)
    np.testing.assert_allclose(np.asarray(out_big), np.asarray(ref_big),
                               rtol=1e-5, atol=1e-5)
    assert out_big.shape == (200, module.no_of_embeddings)

    # Case 3: explicit dims, D_total=200 -> 2 column groups; feature 2's 50
    # columns span the 128-column boundary and are split across two slabs.
    cat_dims2 = [100, 80, 60, 40]
    emb_dims2 = [(100, 50), (80, 50), (60, 50), (40, 50)]
    module2 = EmbeddingPallas(cat_dims2, 0.0, emb_dims2, key=k_param2)
    data2 = make_data(k_data3, 40, cat_dims2)
    out2 = jax.block_until_ready(module2(data2))
    ref2 = _reference_forward(data2, module2.tables)
    np.testing.assert_allclose(np.asarray(out2), np.asarray(ref2),
                               rtol=1e-5, atol=1e-5)
    assert out2.shape == (40, module2.no_of_embeddings)

    print("KERNEL_OK")
</pallas_src>

<mosaic_0001>
module attributes {stable_mosaic.version = 11 : i64} {
  func.func @kernel(%arg0: i32, %arg1: memref<8x4xi32, #tpu.memory_space<vmem>>, %arg2: memref<40x128xf32, #tpu.memory_space<vmem>>, %arg3: memref<8x128xf32, #tpu.memory_space<vmem>>) attributes {dimension_semantics = [#tpu.dimension_semantics<parallel>], iteration_bounds = array<i64: 1>, scalar_prefetch = 0 : i64, scratch_operands = 0 : i64, tpu.core_type = #tpu.core_type<tc>, window_params = [{transform_indices = @transform_0, window_bounds = array<i64: 8, 4>}, {pipeline_mode = #tpu.pipeline_mode<synchronous>, transform_indices = @transform_1, window_bounds = array<i64: 40, 128>}, {transform_indices = @transform_2, window_bounds = array<i64: 8, 128>}]} {
    %0 = tpu.iota {dimensions = array<i32: 1>} : vector<8x40xi32>
    %c0 = arith.constant 0 : index
    %c0_0 = arith.constant 0 : index
    %1 = vector.load %arg2[%c0, %c0_0] : memref<40x128xf32, #tpu.memory_space<vmem>>, vector<40x128xf32>
    %c0_1 = arith.constant 0 : index
    %c0_2 = arith.constant 0 : index
    %2 = vector.load %arg1[%c0_1, %c0_2] : memref<8x4xi32, #tpu.memory_space<vmem>>, vector<8x1xi32>
    %c0_i32 = arith.constant 0 : i32
    %3 = vector.broadcast %c0_i32 : i32 to vector<8x1xi32>
    %4 = arith.addi %2, %3 : vector<8x1xi32>
    %5 = vector.broadcast %4 : vector<8x1xi32> to vector<8x40xi32>
    %6 = arith.cmpi eq, %0, %5 : vector<8x40xi32>
    %c0_3 = arith.constant 0 : index
    %c1 = arith.constant 1 : index
    %7 = vector.load %arg1[%c0_3, %c1] : memref<8x4xi32, #tpu.memory_space<vmem>>, vector<8x1xi32>
    %c10_i32 = arith.constant 10 : i32
    %8 = vector.broadcast %c10_i32 : i32 to vector<8x1xi32>
    %9 = arith.addi %7, %8 : vector<8x1xi32>
    %10 = vector.broadcast %9 : vector<8x1xi32> to vector<8x40xi32>
    %11 = arith.cmpi eq, %0, %10 : vector<8x40xi32>
    %12 = arith.ori %6, %11 : vector<8x40xi1>
    %c0_4 = arith.constant 0 : index
    %c2 = arith.constant 2 : index
    %13 = vector.load %arg1[%c0_4, %c2] : memref<8x4xi32, #tpu.memory_space<vmem>>, vector<8x1xi32>
    %c17_i32 = arith.constant 17 : i32
    %14 = vector.broadcast %c17_i32 : i32 to vector<8x1xi32>
    %15 = arith.addi %13, %14 : vector<8x1xi32>
    %16 = vector.broadcast %15 : vector<8x1xi32> to vector<8x40xi32>
    %17 = arith.cmpi eq, %0, %16 : vector<8x40xi32>
    %18 = arith.ori %12, %17 : vector<8x40xi1>
    %c0_5 = arith.constant 0 : index
    %c3 = arith.constant 3 : index
    %19 = vector.load %arg1[%c0_5, %c3] : memref<8x4xi32, #tpu.memory_space<vmem>>, vector<8x1xi32>
    %c33_i32 = arith.constant 33 : i32
    %20 = vector.broadcast %c33_i32 : i32 to vector<8x1xi32>
    %21 = arith.addi %19, %20 : vector<8x1xi32>
    %22 = vector.broadcast %21 : vector<8x1xi32> to vector<8x40xi32>
    %23 = arith.cmpi eq, %0, %22 : vector<8x40xi32>
    %24 = arith.ori %18, %23 : vector<8x40xi1>
    %25 = arith.extui %24 : vector<8x40xi1> to vector<8x40xi32>
    %26 = arith.sitofp %25 : vector<8x40xi32> to vector<8x40xf32>
    %cst = arith.constant dense<0.000000e+00> : vector<8x128xf32>
    %27 = tpu.matmul %26, %1, %cst {dimension_numbers = #tpu.dot_dimension_numbers<[1], [0], [0], [1], [0, 0, 1, 1], [], []>} : vector<8x40xf32>, vector<40x128xf32>, vector<8x128xf32> -> vector<8x128xf32>
    %c0_6 = arith.constant 0 : index
    %c0_7 = arith.constant 0 : index
    %28 = vector.load %arg3[%c0_6, %c0_7] : memref<8x128xf32, #tpu.memory_space<vmem>>, vector<8x128xf32>
    tpu.vector_store %arg3[%c0_6, %c0_7], %27 {strides = array<i32>} : memref<8x128xf32, #tpu.memory_space<vmem>>, vector<8x128xf32>,
    return
  }
  func.func @transform_0(%arg0: i32) -> (i32, i32) {
    %c0_i32 = arith.constant 0 : i32
    %c0_i32_0 = arith.constant 0 : i32
    return %arg0, %c0_i32 : i32, i32
  }
  func.func @transform_1(%arg0: i32) -> (i32, i32) {
    %c0_i32 = arith.constant 0 : i32
    %c0_i32_0 = arith.constant 0 : i32
    %c0_i32_1 = arith.constant 0 : i32
    return %c0_i32, %c0_i32_0 : i32, i32
  }
  func.func @transform_2(%arg0: i32) -> (i32, i32) {
    %c0_i32 = arith.constant 0 : i32
    %c0_i32_0 = arith.constant 0 : i32
    return %arg0, %c0_i32 : i32, i32
  }
}

</mosaic_0001>

<llo_original>
// kernel: _embedding_forward_impl.1
$region0: #{_embedding_forward_impl.1}
  #allocation0 [shape = 'u32[]', space=smem, size = 0x4, offset = 0x4, fixed_abs, tag = 'smem constant byte address 0x4 - core index']
  #allocation1 [shape = 'u32[144,128]{1,0:T(1,128)}', space=vmem, size = 0x12000, scoped, tag = 'internal scratch']
  %s0 = inlined_call_operand.vmem [shape: s32[8,4], index: 0, kind: input, shape index: {}]
  %s1 = inlined_call_operand.hbm [shape: f32[40,128], index: 1, kind: input, shape index: {}]
  %s2 = inlined_call_operand.hbm [shape: f32[8,128], index: 2, kind: output, shape index: {}]
  %s3 = sld [smem:[#allocation0]]
  $region22: #{_embedding_forward_impl.1} parent=0
    _
  %s5 = ssub.s32 1, %s3
  %s6 = scalar_select 0, %s5, %s3
  $region1: #{_embedding_forward_impl.1} parent=0
    #allocation2 [shape = 'u8[20480]{0}', space=vmem, size = 0x5000, scoped, tag = 'input window, operand 1, single buffered']
    #allocation3 [shape = 's32[1]{0}', space=sflag, size = 0x4, scoped, tag = 'scoped memory for _embedding_forward_impl.1']
    #allocation4 [shape = 's32[1]{0}', space=sflag, size = 0x4, scoped, tag = 'scoped memory for _embedding_forward_impl.1']
    #allocation5 [shape = 'u8[4096]{0}', space=vmem, size = 0x1000, scoped, tag = 'output window, operand 0, single buffered']
    %7 = vsyncpa [#allocation3], 0
    %8 = vsyncpa [#allocation4], 0
    // Predicated region
    $region2: #{_embedding_forward_impl.1} parent=1 // pred_check
      _
    $region3: #{_embedding_forward_impl.1} parent=1 // pred_check_branch
      %10 = sbr.rel (0) target = $region5
    $region4: #{_embedding_forward_impl.1} parent=1 // pred_region
      _
    $region5: #{_embedding_forward_impl.1} parent=1 // pred_fallthru
      _
    // Predicated region
    $region6: #{_embedding_forward_impl.1} parent=1 // pred_check
      _
    $region7: #{_embedding_forward_impl.1} parent=1 // pred_check_branch
      %12 = sbr.rel (0) target = $region9
    $region8: #{_embedding_forward_impl.1} parent=1 // pred_region
      %s14 = ssub.s32 640, 640
      %15 = vsyncadd [#allocation3], %s14
      %s16 = sshll.u32 [#allocation2], 4
      %s17 = int_to_ptr.vmem [resolvable:$true] %s16
      %22 = dma.hbm_to_vmem [thread:$0]  %s1, 640, %s17, [#allocation3], 128, 128, 8
    $region9: #{_embedding_forward_impl.1} parent=1 // pred_fallthru
      _
    // Predicated region
    $region10: #{_embedding_forward_impl.1} parent=1 // pred_check
      _
    $region11: #{_embedding_forward_impl.1} parent=1 // pred_check_branch
      %24 = sbr.rel (0) target = $region13
    $region12: #{_embedding_forward_impl.1} parent=1 // pred_region
      %25 = dma.done [#allocation3], 640
    $region13: #{_embedding_forward_impl.1} parent=1 // pred_fallthru
      _
    %v26 = vlaneseq
    %v27 = vand.u32 %v26, 127
    %v28 = vld [vmem:[#allocation2] sm:$0xff]
    %v29 = vld [vmem:[#allocation2 + $0x8] sm:$0xff]
    %v30 = vld [vmem:[#allocation2 + $0x10] sm:$0xff]
    %v31 = vld [vmem:[#allocation2 + $0x18] sm:$0xff]
    %v32 = vld [vmem:[#allocation2 + $0x20] sm:$0xff]
    %v33 = vld [vmem:[%s0] sm:$0xff]
    %34 = vset.pattern.permute.xlu0 0
    %35 = vperm.xlu0 %34, %v33
    %v36 = vpop.permute.xlu0 %35
    %vm37 = vcmp.eq.s32.totalorder %v27, %v36
    %v38 = vadd.s32 %v33, 10
    %39 = vset.pattern.permute.xlu0 1
    %40 = vperm.xlu0 %39, %v38
    %v41 = vpop.permute.xlu0 %40
    %vm42 = vcmp.eq.s32.totalorder %v27, %v41
    %vm43 = vmor %vm37, %vm42
    %v44 = vadd.s32 %v33, 17
    %45 = vset.pattern.permute.xlu0 2
    %46 = vperm.xlu0 %45, %v44
    %v47 = vpop.permute.xlu0 %46
    %vm48 = vcmp.eq.s32.totalorder %v27, %v47
    %vm49 = vmor %vm43, %vm48
    %v50 = vadd.s32 %v33, 33
    %51 = vset.pattern.permute.xlu0 3
    %52 = vperm.xlu0 %51, %v50
    %v53 = vpop.permute.xlu0 %52
    %vm54 = vcmp.eq.s32.totalorder %v27, %v53
    %vm55 = vmor %vm49, %vm54
    %v56 = vsel %vm55, 1, 0
    %v57 = vcvt.s32.f32 %v56
    %vm58 = vcmask 326656
    %v60 = vsel %vm58, %v57, 0
    %62 = vmatprep.subr.mxu0 0.0
    %63 = vmatpush1.msra.mxu0 %v28
    %64 = vmatprep.subr.mxu0 0.0
    %65 = vmatpush1.msra.mxu0 %v29
    %66 = vmatprep.subr.mxu0 0.0
    %67 = vmatpush1.msra.mxu0 %v30
    %68 = vmatprep.subr.mxu0 0.0
    %69 = vmatpush1.msra.mxu0 %v31
    %70 = vmatprep.subr.mxu0 0.0
    %71 = vmatpush1.msra.mxu0 %v32
    %72 = vmatprep.subr.mxu0 0.0
    %73 = vmatpush1.msra.mxu0 0.0
    %74 = vmatprep.subr.mxu0 0.0
    %75 = vmatpush1.msra.mxu0 0.0
    %76 = vmatprep.subr.mxu0 0.0
    %77 = vmatpush1.msra.mxu0 0.0
    %78 = vmatprep.subr.mxu0 0.0
    %79 = vmatpush1.msra.mxu0 0.0
    %80 = vmatprep.subr.mxu0 0.0
    %81 = vmatpush1.msra.mxu0 0.0
    %82 = vmatprep.subr.mxu0 0.0
    %83 = vmatpush1.msra.mxu0 0.0
    %84 = vmatprep.subr.mxu0 0.0
    %85 = vmatpush1.msra.mxu0 0.0
    %86 = vmatprep.subr.mxu0 0.0
    %87 = vmatpush1.msra.mxu0 0.0
    %88 = vmatprep.subr.mxu0 0.0
    %89 = vmatpush1.msra.mxu0 0.0
    %90 = vmatprep.subr.mxu0 0.0
    %91 = vmatpush1.msra.mxu0 0.0
    %92 = vmatprep.subr.mxu0 0.0
    %93 = vmatpush1.msra.mxu0 0.0
    %94 = vmatprep.subr.mxu0 0.0
    %95 = vmatpush1.msra.mxu0 0.0
    %96 = vmatprep.subr.mxu0 0.0
    %97 = vmatpush1.msra.mxu0 0.0
    %98 = vmatprep.subr.mxu0 0.0
    %99 = vmatpush1.msra.mxu0 0.0
    %100 = vmatprep.subr.mxu0 0.0
    %101 = vmatpush1.msra.mxu0 0.0
    %102 = vmatprep.subr.mxu0 0.0
    %103 = vmatpush1.msra.mxu0 0.0
    %104 = vmatprep.subr.mxu0 0.0
    %105 = vmatpush1.msra.mxu0 0.0
    %106 = vmatprep.subr.mxu0 0.0
    %107 = vmatpush1.msra.mxu0 0.0
    %108 = vmatprep.subr.mxu0 0.0
    %109 = vmatpush1.msra.mxu0 0.0
    %110 = vmatprep.subr.mxu0 0.0
    %111 = vmatpush1.msra.mxu0 0.0
    %112 = vmatprep.subr.mxu0 0.0
    %113 = vmatpush1.msra.mxu0 0.0
    %114 = vmatprep.subr.mxu0 0.0
    %115 = vmatpush1.msra.mxu0 0.0
    %116 = vmatprep.subr.mxu0 0.0
    %117 = vmatpush1.msra.mxu0 0.0
    %118 = vmatprep.subr.mxu0 0.0
    %119 = vmatpush1.msra.mxu0 0.0
    %120 = vmatprep.subr.mxu0 0.0
    %121 = vmatpush1.msra.mxu0 0.0
    %122 = vmatprep.subr.mxu0 0.0
    %123 = vmatpush1.msra.mxu0 0.0
    %124 = vmatprep.subr.mxu0 0.0
    %125 = vmatpush1.msra.mxu0 0.0
    %126 = vmatprep.mubr.f32.mxu0 0.0
    %127 = vmatmul.mubr.f32.gmra.mrb[0].mxu0 %v60
    %v128 = vpop.f32.mrb[0].mxu0
    %v129 = vadd.f32 0.0, %v128
    %v130 = vpop.f32.mrb[0].mxu0
    %131 = vdwg.mxu0
    %132 = vst [vmem:[#allocation5] sm:$0xff] %v129
    // Predicated region
    $region14: #{_embedding_forward_impl.1} parent=1 // pred_check
      _
    $region15: #{_embedding_forward_impl.1} parent=1 // pred_check_branch
      %134 = sbr.rel (0) target = $region17
    $region16: #{_embedding_forward_impl.1} parent=1 // pred_region
      %s136 = ssub.s32 128, 128
      %137 = vsyncadd [#allocation4], %s136
      %s139 = sshll.u32 [#allocation5], 4
      %s140 = int_to_ptr.vmem [resolvable:$true] %s139
      %142 = dma.vmem_to_hbm [thread:$0]  %s140, 128, %s2, [#allocation4]
    $region17: #{_embedding_forward_impl.1} parent=1 // pred_fallthru
      _
    // Predicated region
    $region18: #{_embedding_forward_impl.1} parent=1 // pred_check
      _
    $region19: #{_embedding_forward_impl.1} parent=1 // pred_check_branch
      %144 = sbr.rel (0) target = $region21
    $region20: #{_embedding_forward_impl.1} parent=1 // pred_region
      %145 = dma.done [#allocation4], 128
    $region21: #{_embedding_forward_impl.1} parent=1 // pred_fallthru
      _
    %146 = vsyncpa [#allocation3], 1
    %147 = vsyncpa [#allocation4], 1

</llo_original>
